<compile_context>
chip_gen: v7x
topology: tpu7x:2x2x1
jax: 0.10.0
libtpu: 0.0.40
codegen_flags: <defaults>
</compile_context>

<pallas_src>
import functools

import jax
import jax.numpy as jnp
from jax.experimental import pallas as pl
from jax.experimental.pallas import tpu as pltpu

NEG_SLOPE = 0.2   # GATConv default negative_slope
TILE = 128        # node-tile size (targets and sources)
LANE = 128        # lane width for the padded final output


# --------------------------------------------------------------------------- #
# Kernel 1: linear projection + per-head attention scalars
# --------------------------------------------------------------------------- #
def _project_kernel(x_ref, w_ref, amat_src_ref, amat_dst_ref,
                    xw_ref, asrc_t_ref, adst_ref):
    x = x_ref[...].astype(jnp.float32)                       # [TM, F_in]
    w = w_ref[...].astype(jnp.float32)                       # [F_in, H*Cp]
    xw = jnp.dot(x, w, preferred_element_type=jnp.float32)   # [TM, H*Cp]  (MXU)
    xw_ref[...] = xw
    # a_dst[i, h] = <xw[i, h*C:(h+1)*C], att_dst[h]>  via block-diagonal matmul
    adst_ref[...] = jnp.dot(xw, amat_dst_ref[...],
                            preferred_element_type=jnp.float32)    # [TM, H]
    asrc = jnp.dot(xw, amat_src_ref[...],
                   preferred_element_type=jnp.float32)             # [TM, H]
    asrc_t_ref[...] = asrc.T                                       # [H, TM] (lane = node)


# --------------------------------------------------------------------------- #
# Kernel 2: masked attention + online softmax + aggregation (+ optional log_softmax)
# --------------------------------------------------------------------------- #
def _attention_kernel(adst_ref, asrct_ref, xw_ref, adj_ref, bias_ref, out_ref,
                      m_scr, l_scr, acc_scr, *,
                      heads, c_pad, valid_cols, apply_log_softmax):
    k = pl.program_id(1)

    @pl.when(k == 0)
    def _():
        m_scr[...] = jnp.full_like(m_scr, -1e30)
        l_scr[...] = jnp.zeros_like(l_scr)
        acc_scr[...] = jnp.zeros_like(acc_scr)

    a_dst = adst_ref[...]              # [TM, H]
    a_src_t = asrct_ref[...]           # [H, TK]
    mask = adj_ref[...] > 0            # [TM, TK] bool (int8 adjacency)
    xw_s = xw_ref[...]                 # [TK, H*Cp]

    for h in range(heads):             # static unroll (H = 8 or 1)
        e = a_dst[:, h:h + 1] + a_src_t[h:h + 1, :]            # [TM, TK]
        e = jnp.where(e > 0, e, NEG_SLOPE * e)                 # LeakyReLU(0.2)
        e = jnp.where(mask, e, -1e30)                          # mask non-edges

        m_old = m_scr[h]                                       # [TM, 1]
        m_new = jnp.maximum(m_old, jnp.max(e, axis=-1, keepdims=True))
        alpha = jnp.exp(m_old - m_new)                         # rescale old stats
        p = jnp.exp(e - m_new)                                 # [TM, TK]
        p = jnp.where(mask, p, 0.0)

        l_scr[h] = alpha * l_scr[h] + jnp.sum(p, axis=-1, keepdims=True)
        pv = jnp.dot(p.astype(jnp.bfloat16),
                     xw_s[:, h * c_pad:(h + 1) * c_pad].astype(jnp.bfloat16),
                     preferred_element_type=jnp.float32)       # [TM, Cp]  (MXU, bf16)
        acc_scr[h] = alpha * acc_scr[h] + pv
        m_scr[h] = m_new

    @pl.when(k == pl.num_programs(1) - 1)
    def _():
        pieces = []
        for h in range(heads):
            inv = pl.reciprocal(jnp.maximum(l_scr[h], 1e-30), approx=True)  # [TM, 1]
            pieces.append(acc_scr[h] * inv)                                  # [TM, Cp]
        out = pieces[0] if heads == 1 else jnp.concatenate(pieces, axis=-1)  # [TM, H*Cp]
        out = out + bias_ref[...]
        if apply_log_softmax:
            col = jax.lax.broadcasted_iota(jnp.int32, out.shape, 1)
            valid = col < valid_cols
            z = jnp.where(valid, out, -1e30)
            mx = jnp.max(z, axis=-1, keepdims=True)
            ssum = jnp.sum(jnp.where(valid, jnp.exp(z - mx), 0.0),
                           axis=-1, keepdims=True)
            out = out - (mx + jnp.log(ssum))
        out_ref[...] = out.astype(out_ref.dtype)


# --------------------------------------------------------------------------- #
# Host-side helpers (parameter repacking for the lane-friendly layout)
# --------------------------------------------------------------------------- #
def _block_diag_att(att, c_pad):
    """att: [H, C] -> block-diagonal [H*c_pad, H] so that xw @ A gives per-head scalars."""
    h, c = att.shape
    att_p = jnp.zeros((h, c_pad), att.dtype).at[:, :c].set(att)
    eye = jnp.eye(h, dtype=att.dtype)
    return (att_p[:, :, None] * eye[:, None, :]).reshape(h * c_pad, h)


def _pad_weight(w, heads, c, c_pad):
    if c_pad == c:
        return w
    f_in = w.shape[0]
    w3 = w.reshape(f_in, heads, c)
    out = jnp.zeros((f_in, heads, c_pad), w.dtype).at[:, :, :c].set(w3)
    return out.reshape(f_in, heads * c_pad)


def _pad_bias(b, heads, c, c_pad):
    if c_pad == c:
        return b.reshape(1, heads * c)
    b3 = b.reshape(heads, c)
    out = jnp.zeros((heads, c_pad), b.dtype).at[:, :c].set(b3)
    return out.reshape(1, heads * c_pad)


# --------------------------------------------------------------------------- #
# One GAT layer = projection call + attention call
# --------------------------------------------------------------------------- #
def gat_layer(x_p, adj_p, w, att_src, att_dst, bias, *, heads, out_ch,
              c_pad=None, apply_log_softmax=False):
    n_pad, f_in = x_p.shape
    if c_pad is None:
        c_pad = out_ch
    hcp = heads * c_pad
    tm = tk = TILE
    n_i, n_k = n_pad // tm, n_pad // tk

    w_p = _pad_weight(w, heads, out_ch, c_pad)            # [F_in, H*Cp]
    amat_src = _block_diag_att(att_src, c_pad)            # [H*Cp, H]
    amat_dst = _block_diag_att(att_dst, c_pad)            # [H*Cp, H]
    bias_p = _pad_bias(bias, heads, out_ch, c_pad)        # [1, H*Cp]

    # ---- projection: xw, a_src^T, a_dst ------------------------------------
    xw, asrc_t, adst = pl.pallas_call(
        _project_kernel,
        out_shape=(jax.ShapeDtypeStruct((n_pad, hcp), jnp.float32),
                   jax.ShapeDtypeStruct((heads, n_pad), jnp.float32),
                   jax.ShapeDtypeStruct((n_pad, heads), jnp.float32)),
        grid=(n_i,),
        in_specs=[pl.BlockSpec((tm, f_in), lambda i: (i, 0)),
                  pl.BlockSpec((f_in, hcp), lambda i: (0, 0)),
                  pl.BlockSpec((hcp, heads), lambda i: (0, 0)),
                  pl.BlockSpec((hcp, heads), lambda i: (0, 0))],
        out_specs=(pl.BlockSpec((tm, hcp), lambda i: (i, 0)),
                   pl.BlockSpec((heads, tm), lambda i: (0, i)),
                   pl.BlockSpec((tm, heads), lambda i: (i, 0))),
        compiler_params=pltpu.CompilerParams(dimension_semantics=("parallel",)),
    )(x_p, w_p, amat_src, amat_dst)

    # ---- attention + online softmax + aggregation ---------------------------
    kernel = functools.partial(_attention_kernel, heads=heads, c_pad=c_pad,
                               valid_cols=out_ch,
                               apply_log_softmax=apply_log_softmax)
    cost = pl.CostEstimate(
        flops=int(heads * n_pad * n_pad * (2 * c_pad + 6)),
        transcendentals=int(heads * n_pad * n_pad),
        bytes_accessed=int(n_pad * n_pad                      # int8 adj
                           + n_i * n_pad * hcp * 4            # xw re-streamed per target tile
                           + 2 * n_pad * hcp * 4),
    )
    out = pl.pallas_call(
        kernel,
        out_shape=jax.ShapeDtypeStruct((n_pad, hcp), jnp.float32),
        grid=(n_i, n_k),
        in_specs=[pl.BlockSpec((tm, heads), lambda i, k: (i, 0)),   # a_dst (target tile)
                  pl.BlockSpec((heads, tk), lambda i, k: (0, k)),   # a_src^T (source tile)
                  pl.BlockSpec((tk, hcp), lambda i, k: (k, 0)),     # xw (source tile)
                  pl.BlockSpec((tm, tk), lambda i, k: (i, k)),      # adj tile (int8)
                  pl.BlockSpec((1, hcp), lambda i, k: (0, 0))],     # bias
        out_specs=pl.BlockSpec((tm, hcp), lambda i, k: (i, 0)),     # resident over k
        scratch_shapes=[pltpu.VMEM((heads, tm, 1), jnp.float32),    # running max
                        pltpu.VMEM((heads, tm, 1), jnp.float32),    # running denom
                        pltpu.VMEM((heads, tm, c_pad), jnp.float32)],  # accumulator
        compiler_params=pltpu.CompilerParams(
            dimension_semantics=("parallel", "arbitrary")),
        cost_estimate=cost,
    )(adst, asrc_t, xw, adj_p, bias_p)
    return out


# --------------------------------------------------------------------------- #
# Full network
# --------------------------------------------------------------------------- #
def gat_net(x, adj, params):
    n, f_in = x.shape
    n_pad = int(TILE * pl.cdiv(n, TILE))

    x_p = jnp.zeros((n_pad, f_in), jnp.float32).at[:n, :].set(x.astype(jnp.float32))
    adj_p = jnp.zeros((n_pad, n_pad), jnp.int8).at[:n, :n].set(
        (adj > 0).astype(jnp.int8))

    # gat1: F_in -> 8 channels x 8 heads (concat => 64), no activation in between (matches spec)
    h = gat_layer(x_p, adj_p, params["w1"], params["att_src1"],
                  params["att_dst1"], params["bias1"], heads=8, out_ch=8)
    # gat2: 64 -> 7 channels x 1 head, padded to 128 lanes, fused log_softmax(dim=1)
    out = gat_layer(h, adj_p, params["w2"], params["att_src2"],
                    params["att_dst2"], params["bias2"], heads=1, out_ch=7,
                    c_pad=LANE, apply_log_softmax=True)
    return out[:n, :7]


def init_params(key, f_in):
    ks = jax.random.split(key, 8)

    def glorot(k, shape):
        fan_in, fan_out = shape[0], shape[-1]
        lim = jnp.sqrt(6.0 / (fan_in + fan_out))
        return jax.random.uniform(k, shape, jnp.float32, -lim, lim)

    return {
        "w1": glorot(ks[0], (f_in, 8 * 8)),
        "att_src1": glorot(ks[1], (8, 8)),
        "att_dst1": glorot(ks[2], (8, 8)),
        "bias1": jnp.zeros((8 * 8,), jnp.float32),
        "w2": glorot(ks[3], (8 * 8, 7)),
        "att_src2": glorot(ks[4], (1, 7)),
        "att_dst2": glorot(ks[5], (1, 7)),
        "bias2": jnp.zeros((7,), jnp.float32),
    }


if __name__ == "__main__":
    key = jax.random.PRNGKey(0)
    k_x, k_adj, k_p = jax.random.split(key, 3)

    N, F_IN = 32, 16  # small synthetic graph (Pubmed stand-in)
    x = jax.random.normal(k_x, (N, F_IN), jnp.float32)

    # random directed edges + self-loops -> dense adjacency mask adj[i, j]: edge j -> i
    rand_edges = jax.random.bernoulli(k_adj, 0.2, (N, N)).astype(jnp.float32)
    adj = jnp.clip(rand_edges + jnp.eye(N, dtype=jnp.float32), 0.0, 1.0)

    params = init_params(k_p, F_IN)

    out = gat_net(x, adj, params)
    out = jax.block_until_ready(out)

    assert out.shape == (N, 7)
    # log_softmax rows should exponentiate-sum to ~1
    row_sums = jnp.sum(jnp.exp(out), axis=1)
    assert bool(jnp.all(jnp.isfinite(out))) and bool(
        jnp.allclose(row_sums, 1.0, atol=1e-4))

    print("KERNEL_OK")
</pallas_src>

<mosaic_0001>
module attributes {stable_mosaic.version = 11 : i64} {
  func.func @_project_kernel(%arg0: i32, %arg1: memref<128x16xf32, #tpu.memory_space<vmem>>, %arg2: memref<16x64xf32, #tpu.memory_space<vmem>>, %arg3: memref<64x8xf32, #tpu.memory_space<vmem>>, %arg4: memref<64x8xf32, #tpu.memory_space<vmem>>, %arg5: memref<128x64xf32, #tpu.memory_space<vmem>>, %arg6: memref<8x128xf32, #tpu.memory_space<vmem>>, %arg7: memref<128x8xf32, #tpu.memory_space<vmem>>) attributes {dimension_semantics = [#tpu.dimension_semantics<parallel>], iteration_bounds = array<i64: 1>, scalar_prefetch = 0 : i64, scratch_operands = 0 : i64, tpu.core_type = #tpu.core_type<tc>, window_params = [{transform_indices = @transform_0, window_bounds = array<i64: 128, 16>}, {pipeline_mode = #tpu.pipeline_mode<synchronous>, transform_indices = @transform_1, window_bounds = array<i64: 16, 64>}, {pipeline_mode = #tpu.pipeline_mode<synchronous>, transform_indices = @transform_2, window_bounds = array<i64: 64, 8>}, {pipeline_mode = #tpu.pipeline_mode<synchronous>, transform_indices = @transform_3, window_bounds = array<i64: 64, 8>}, {transform_indices = @transform_4, window_bounds = array<i64: 128, 64>}, {transform_indices = @transform_5, window_bounds = array<i64: 8, 128>}, {transform_indices = @transform_6, window_bounds = array<i64: 128, 8>}]} {
    %c0 = arith.constant 0 : index
    %c0_0 = arith.constant 0 : index
    %0 = vector.load %arg1[%c0, %c0_0] : memref<128x16xf32, #tpu.memory_space<vmem>>, vector<128x16xf32>
    %c0_1 = arith.constant 0 : index
    %c0_2 = arith.constant 0 : index
    %1 = vector.load %arg2[%c0_1, %c0_2] : memref<16x64xf32, #tpu.memory_space<vmem>>, vector<16x64xf32>
    %cst = arith.constant dense<0.000000e+00> : vector<128x64xf32>
    %2 = tpu.matmul %0, %1, %cst {dimension_numbers = #tpu.dot_dimension_numbers<[1], [0], [0], [1], [0, 0, 1, 1], [], []>} : vector<128x16xf32>, vector<16x64xf32>, vector<128x64xf32> -> vector<128x64xf32>
    %c0_3 = arith.constant 0 : index
    %c0_4 = arith.constant 0 : index
    %3 = vector.load %arg5[%c0_3, %c0_4] : memref<128x64xf32, #tpu.memory_space<vmem>>, vector<128x64xf32>
    tpu.vector_store %arg5[%c0_3, %c0_4], %2 {strides = array<i32>} : memref<128x64xf32, #tpu.memory_space<vmem>>, vector<128x64xf32>,
    %c0_5 = arith.constant 0 : index
    %c0_6 = arith.constant 0 : index
    %4 = vector.load %arg4[%c0_5, %c0_6] : memref<64x8xf32, #tpu.memory_space<vmem>>, vector<64x8xf32>
    %cst_7 = arith.constant dense<0.000000e+00> : vector<128x8xf32>
    %5 = tpu.matmul %2, %4, %cst_7 {dimension_numbers = #tpu.dot_dimension_numbers<[1], [0], [0], [1], [0, 0, 1, 1], [], []>} : vector<128x64xf32>, vector<64x8xf32>, vector<128x8xf32> -> vector<128x8xf32>
    %c0_8 = arith.constant 0 : index
    %c0_9 = arith.constant 0 : index
    %6 = vector.load %arg7[%c0_8, %c0_9] : memref<128x8xf32, #tpu.memory_space<vmem>>, vector<128x8xf32>
    tpu.vector_store %arg7[%c0_8, %c0_9], %5 {strides = array<i32>} : memref<128x8xf32, #tpu.memory_space<vmem>>, vector<128x8xf32>,
    %c0_10 = arith.constant 0 : index
    %c0_11 = arith.constant 0 : index
    %7 = vector.load %arg3[%c0_10, %c0_11] : memref<64x8xf32, #tpu.memory_space<vmem>>, vector<64x8xf32>
    %cst_12 = arith.constant dense<0.000000e+00> : vector<128x8xf32>
    %8 = tpu.matmul %2, %7, %cst_12 {dimension_numbers = #tpu.dot_dimension_numbers<[1], [0], [0], [1], [0, 0, 1, 1], [], []>} : vector<128x64xf32>, vector<64x8xf32>, vector<128x8xf32> -> vector<128x8xf32>
    %9 = tpu.transpose %8, [1, 0] : vector<128x8xf32> -> vector<8x128xf32>
    %c0_13 = arith.constant 0 : index
    %c0_14 = arith.constant 0 : index
    %10 = vector.load %arg6[%c0_13, %c0_14] : memref<8x128xf32, #tpu.memory_space<vmem>>, vector<8x128xf32>
    tpu.vector_store %arg6[%c0_13, %c0_14], %9 {strides = array<i32>} : memref<8x128xf32, #tpu.memory_space<vmem>>, vector<8x128xf32>,
    return
  }
  func.func @transform_0(%arg0: i32) -> (i32, i32) {
    %c0_i32 = arith.constant 0 : i32
    %c0_i32_0 = arith.constant 0 : i32
    return %arg0, %c0_i32 : i32, i32
  }
  func.func @transform_1(%arg0: i32) -> (i32, i32) {
    %c0_i32 = arith.constant 0 : i32
    %c0_i32_0 = arith.constant 0 : i32
    %c0_i32_1 = arith.constant 0 : i32
    return %c0_i32, %c0_i32_0 : i32, i32
  }
  func.func @transform_2(%arg0: i32) -> (i32, i32) {
    %c0_i32 = arith.constant 0 : i32
    %c0_i32_0 = arith.constant 0 : i32
    %c0_i32_1 = arith.constant 0 : i32
    return %c0_i32, %c0_i32_0 : i32, i32
  }
  func.func @transform_3(%arg0: i32) -> (i32, i32) {
    %c0_i32 = arith.constant 0 : i32
    %c0_i32_0 = arith.constant 0 : i32
    %c0_i32_1 = arith.constant 0 : i32
    return %c0_i32, %c0_i32_0 : i32, i32
  }
  func.func @transform_4(%arg0: i32) -> (i32, i32) {
    %c0_i32 = arith.constant 0 : i32
    %c0_i32_0 = arith.constant 0 : i32
    return %arg0, %c0_i32 : i32, i32
  }
  func.func @transform_5(%arg0: i32) -> (i32, i32) {
    %c0_i32 = arith.constant 0 : i32
    %c0_i32_0 = arith.constant 0 : i32
    return %c0_i32, %arg0 : i32, i32
  }
  func.func @transform_6(%arg0: i32) -> (i32, i32) {
    %c0_i32 = arith.constant 0 : i32
    %c0_i32_0 = arith.constant 0 : i32
    return %arg0, %c0_i32 : i32, i32
  }
}

</mosaic_0001>

<llo_original>
// kernel: tpu_custom_call.1
$region0: #{tpu_custom_call.1}
  #allocation0 [shape = 'u32[]', space=smem, size = 0x4, offset = 0x4, fixed_abs, tag = 'smem constant byte address 0x4 - core index']
  #allocation1 [shape = 'u32[144,128]{1,0:T(1,128)}', space=vmem, size = 0x12000, scoped, tag = 'internal scratch']
  %s0 = inlined_call_operand.vmem [shape: f32[128,16], index: 0, kind: input, shape index: {}]
  %s1 = inlined_call_operand.vmem [shape: f32[16,64], index: 1, kind: input, shape index: {}]
  %s2 = inlined_call_operand.vmem [shape: f32[64,8], index: 2, kind: input, shape index: {}]
  %s3 = inlined_call_operand.vmem [shape: f32[64,8], index: 3, kind: input, shape index: {}]
  %s4 = inlined_call_operand.vmem [shape: f32[128,64], index: 4, kind: output, shape index: {0}]
  %s5 = inlined_call_operand.hbm [shape: f32[8,128], index: 5, kind: output, shape index: {1}]
  %s6 = inlined_call_operand.vmem [shape: f32[128,8], index: 6, kind: output, shape index: {2}]
  %7 = xla_tuple %s4, %s5, %s6
  %s8 = sld [smem:[#allocation0]]
  $region42: #{tpu_custom_call.1} parent=0
    _
  %s10 = ssub.s32 1, %s8
  %s11 = scalar_select 0, %s10, %s8
  $region1: #{tpu_custom_call.1} parent=0
    #allocation2 [shape = 'u8[4096]{0}', space=vmem, size = 0x1000, scoped, tag = 'output window, operand 1, single buffered']
    #allocation3 [shape = 's32[1]{0}', space=sflag, size = 0x4, scoped, tag = 'scoped memory for tpu_custom_call.1']
    %12 = vsyncpa [#allocation3], 0
    // Predicated region
    $region2: #{tpu_custom_call.1} parent=1 // pred_check
      _
    $region3: #{tpu_custom_call.1} parent=1 // pred_check_branch
      %14 = sbr.rel (0) target = $region5
    $region4: #{tpu_custom_call.1} parent=1 // pred_region
      _
    $region5: #{tpu_custom_call.1} parent=1 // pred_fallthru
      _
    // Predicated region
    $region6: #{tpu_custom_call.1} parent=1 // pred_check
      _
    $region7: #{tpu_custom_call.1} parent=1 // pred_check_branch
      %16 = sbr.rel (0) target = $region9
    $region8: #{tpu_custom_call.1} parent=1 // pred_region
      _
    $region9: #{tpu_custom_call.1} parent=1 // pred_fallthru
      _
    // Predicated region
    $region10: #{tpu_custom_call.1} parent=1 // pred_check
      _
    $region11: #{tpu_custom_call.1} parent=1 // pred_check_branch
      %18 = sbr.rel (0) target = $region13
    $region12: #{tpu_custom_call.1} parent=1 // pred_region
      _
    $region13: #{tpu_custom_call.1} parent=1 // pred_fallthru
      _
    // Predicated region
    $region14: #{tpu_custom_call.1} parent=1 // pred_check
      _
    $region15: #{tpu_custom_call.1} parent=1 // pred_check_branch
      %20 = sbr.rel (0) target = $region17
    $region16: #{tpu_custom_call.1} parent=1 // pred_region
      _
    $region17: #{tpu_custom_call.1} parent=1 // pred_fallthru
      _
    %v21 = vld [vmem:[%s0] sm:$0xff]
    %v22 = vld [vmem:[%s0 + $0x8] sm:$0xff]
    %v23 = vld [vmem:[%s0 + $0x10] sm:$0xff]
    %v24 = vld [vmem:[%s0 + $0x18] sm:$0xff]
    %v25 = vld [vmem:[%s0 + $0x20] sm:$0xff]
    %v26 = vld [vmem:[%s0 + $0x28] sm:$0xff]
    %v27 = vld [vmem:[%s0 + $0x30] sm:$0xff]
    %v28 = vld [vmem:[%s0 + $0x38] sm:$0xff]
    %v29 = vld [vmem:[%s0 + $0x40] sm:$0xff]
    %v30 = vld [vmem:[%s0 + $0x48] sm:$0xff]
    %v31 = vld [vmem:[%s0 + $0x50] sm:$0xff]
    %v32 = vld [vmem:[%s0 + $0x58] sm:$0xff]
    %v33 = vld [vmem:[%s0 + $0x60] sm:$0xff]
    %v34 = vld [vmem:[%s0 + $0x68] sm:$0xff]
    %v35 = vld [vmem:[%s0 + $0x70] sm:$0xff]
    %v36 = vld [vmem:[%s0 + $0x78] sm:$0xff]
    %v37 = vld [vmem:[%s1] sm:$0xff]
    %v38 = vld [vmem:[%s1 + $0x8] sm:$0xff]
    %vm39 = vcmask 130048
    %v41 = vsel %vm39, %v21, 0
    %v44 = vsel %vm39, %v22, 0
    %v47 = vsel %vm39, %v23, 0
    %v50 = vsel %vm39, %v24, 0
    %v53 = vsel %vm39, %v25, 0
    %v56 = vsel %vm39, %v26, 0
    %v59 = vsel %vm39, %v27, 0
    %v62 = vsel %vm39, %v28, 0
    %v65 = vsel %vm39, %v29, 0
    %v68 = vsel %vm39, %v30, 0
    %v71 = vsel %vm39, %v31, 0
    %v74 = vsel %vm39, %v32, 0
    %v77 = vsel %vm39, %v33, 0
    %v80 = vsel %vm39, %v34, 0
    %v83 = vsel %vm39, %v35, 0
    %v86 = vsel %vm39, %v36, 0
    %88 = vmatprep.subr.mxu0 0.0
    %89 = vmatpush1.msra.mxu0 %v37
    %90 = vmatprep.subr.mxu0 0.0
    %91 = vmatpush1.msra.mxu0 %v38
    %92 = vmatprep.subr.mxu0 0.0
    %93 = vmatpush1.msra.mxu0 0.0
    %94 = vmatprep.subr.mxu0 0.0
    %95 = vmatpush1.msra.mxu0 0.0
    %96 = vmatprep.subr.mxu0 0.0
    %97 = vmatpush1.msra.mxu0 0.0
    %98 = vmatprep.subr.mxu0 0.0
    %99 = vmatpush1.msra.mxu0 0.0
    %100 = vmatprep.subr.mxu0 0.0
    %101 = vmatpush1.msra.mxu0 0.0
    %102 = vmatprep.subr.mxu0 0.0
    %103 = vmatpush1.msra.mxu0 0.0
    %104 = vmatprep.subr.mxu0 0.0
    %105 = vmatpush1.msra.mxu0 0.0
    %106 = vmatprep.subr.mxu0 0.0
    %107 = vmatpush1.msra.mxu0 0.0
    %108 = vmatprep.subr.mxu0 0.0
    %109 = vmatpush1.msra.mxu0 0.0
    %110 = vmatprep.subr.mxu0 0.0
    %111 = vmatpush1.msra.mxu0 0.0
    %112 = vmatprep.subr.mxu0 0.0
    %113 = vmatpush1.msra.mxu0 0.0
    %114 = vmatprep.subr.mxu0 0.0
    %115 = vmatpush1.msra.mxu0 0.0
    %116 = vmatprep.subr.mxu0 0.0
    %117 = vmatpush1.msra.mxu0 0.0
    %118 = vmatprep.subr.mxu0 0.0
    %119 = vmatpush1.msra.mxu0 0.0
    %120 = vmatprep.subr.mxu0 0.0
    %121 = vmatpush1.msra.mxu0 0.0
    %122 = vmatprep.subr.mxu0 0.0
    %123 = vmatpush1.msra.mxu0 0.0
    %124 = vmatprep.subr.mxu0 0.0
    %125 = vmatpush1.msra.mxu0 0.0
    %126 = vmatprep.subr.mxu0 0.0
    %127 = vmatpush1.msra.mxu0 0.0
    %128 = vmatprep.subr.mxu0 0.0
    %129 = vmatpush1.msra.mxu0 0.0
    %130 = vmatprep.subr.mxu0 0.0
    %131 = vmatpush1.msra.mxu0 0.0
    %132 = vmatprep.subr.mxu0 0.0
    %133 = vmatpush1.msra.mxu0 0.0
    %134 = vmatprep.subr.mxu0 0.0
    %135 = vmatpush1.msra.mxu0 0.0
    %136 = vmatprep.subr.mxu0 0.0
    %137 = vmatpush1.msra.mxu0 0.0
    %138 = vmatprep.subr.mxu0 0.0
    %139 = vmatpush1.msra.mxu0 0.0
    %140 = vmatprep.subr.mxu0 0.0
    %141 = vmatpush1.msra.mxu0 0.0
    %142 = vmatprep.subr.mxu0 0.0
    %143 = vmatpush1.msra.mxu0 0.0
    %144 = vmatprep.subr.mxu0 0.0
    %145 = vmatpush1.msra.mxu0 0.0
    %146 = vmatprep.subr.mxu0 0.0
    %147 = vmatpush1.msra.mxu0 0.0
    %148 = vmatprep.subr.mxu0 0.0
    %149 = vmatpush1.msra.mxu0 0.0
    %150 = vmatprep.subr.mxu0 0.0
    %151 = vmatpush1.msra.mxu0 0.0
    %152 = vmatprep.mubr.f32.mxu0 0.0
    %153 = vmatmul.mubr.f32.gmra.mrb[0].mxu0 %v41
    %v154 = vpop.f32.mrb[0].mxu0
    %v155 = vadd.f32 0.0, %v154
    %v156 = vpop.f32.mrb[0].mxu0
    %157 = vmatprep.mubr.f32.mxu0 0.0
    %158 = vmatmul.mubr.f32.gmra.mrb[0].mxu0 %v44
    %v159 = vpop.f32.mrb[0].mxu0
    %v160 = vadd.f32 0.0, %v159
    %v161 = vpop.f32.mrb[0].mxu0
    %162 = vmatprep.mubr.f32.mxu0 0.0
    %163 = vmatmul.mubr.f32.gmra.mrb[0].mxu0 %v47
    %v164 = vpop.f32.mrb[0].mxu0
    %v165 = vadd.f32 0.0, %v164
    %v166 = vpop.f32.mrb[0].mxu0
    %167 = vmatprep.mubr.f32.mxu0 0.0
    %168 = vmatmul.mubr.f32.gmra.mrb[0].mxu0 %v50
    %v169 = vpop.f32.mrb[0].mxu0
    %v170 = vadd.f32 0.0, %v169
    %v171 = vpop.f32.mrb[0].mxu0
    %172 = vmatprep.mubr.f32.mxu0 0.0
    %173 = vmatmul.mubr.f32.gmra.mrb[0].mxu0 %v53
    %v174 = vpop.f32.mrb[0].mxu0
    %v175 = vadd.f32 0.0, %v174
    %v176 = vpop.f32.mrb[0].mxu0
    %177 = vmatprep.mubr.f32.mxu0 0.0
    %178 = vmatmul.mubr.f32.gmra.mrb[0].mxu0 %v56
    %v179 = vpop.f32.mrb[0].mxu0
    %v180 = vadd.f32 0.0, %v179
    %v181 = vpop.f32.mrb[0].mxu0
    %182 = vmatprep.mubr.f32.mxu0 0.0
    %183 = vmatmul.mubr.f32.gmra.mrb[0].mxu0 %v59
    %v184 = vpop.f32.mrb[0].mxu0
    %v185 = vadd.f32 0.0, %v184
    %v186 = vpop.f32.mrb[0].mxu0
    %187 = vmatprep.mubr.f32.mxu0 0.0
    %188 = vmatmul.mubr.f32.gmra.mrb[0].mxu0 %v62
    %v189 = vpop.f32.mrb[0].mxu0
    %v190 = vadd.f32 0.0, %v189
    %v191 = vpop.f32.mrb[0].mxu0
    %192 = vmatprep.mubr.f32.mxu0 0.0
    %193 = vmatmul.mubr.f32.gmra.mrb[0].mxu0 %v65
    %v194 = vpop.f32.mrb[0].mxu0
    %v195 = vadd.f32 0.0, %v194
    %v196 = vpop.f32.mrb[0].mxu0
    %197 = vmatprep.mubr.f32.mxu0 0.0
    %198 = vmatmul.mubr.f32.gmra.mrb[0].mxu0 %v68
    %v199 = vpop.f32.mrb[0].mxu0
    %v200 = vadd.f32 0.0, %v199
    %v201 = vpop.f32.mrb[0].mxu0
    %202 = vmatprep.mubr.f32.mxu0 0.0
    %203 = vmatmul.mubr.f32.gmra.mrb[0].mxu0 %v71
    %v204 = vpop.f32.mrb[0].mxu0
    %v205 = vadd.f32 0.0, %v204
    %v206 = vpop.f32.mrb[0].mxu0
    %207 = vmatprep.mubr.f32.mxu0 0.0
    %208 = vmatmul.mubr.f32.gmra.mrb[0].mxu0 %v74
    %v209 = vpop.f32.mrb[0].mxu0
    %v210 = vadd.f32 0.0, %v209
    %v211 = vpop.f32.mrb[0].mxu0
    %212 = vmatprep.mubr.f32.mxu0 0.0
    %213 = vmatmul.mubr.f32.gmra.mrb[0].mxu0 %v77
    %v214 = vpop.f32.mrb[0].mxu0
    %v215 = vadd.f32 0.0, %v214
    %v216 = vpop.f32.mrb[0].mxu0
    %217 = vmatprep.mubr.f32.mxu0 0.0
    %218 = vmatmul.mubr.f32.gmra.mrb[0].mxu0 %v80
    %v219 = vpop.f32.mrb[0].mxu0
    %v220 = vadd.f32 0.0, %v219
    %v221 = vpop.f32.mrb[0].mxu0
    %222 = vmatprep.mubr.f32.mxu0 0.0
    %223 = vmatmul.mubr.f32.gmra.mrb[0].mxu0 %v83
    %v224 = vpop.f32.mrb[0].mxu0
    %v225 = vadd.f32 0.0, %v224
    %v226 = vpop.f32.mrb[0].mxu0
    %227 = vmatprep.mubr.f32.mxu0 0.0
    %228 = vmatmul.mubr.f32.gmra.mrb[0].mxu0 %v86
    %v229 = vpop.f32.mrb[0].mxu0
    %v230 = vadd.f32 0.0, %v229
    %v231 = vpop.f32.mrb[0].mxu0
    %232 = vdwg.mxu0
    %vm233 = vcmask 523264
    %234 = vst.msk [vmem:[%s4] sm:$0xff] %vm233, %v155
    %235 = vst.msk [vmem:[%s4 + $0x8] sm:$0xff] %vm233, %v160
    %236 = vst.msk [vmem:[%s4 + $0x10] sm:$0xff] %vm233, %v165
    %237 = vst.msk [vmem:[%s4 + $0x18] sm:$0xff] %vm233, %v170
    %238 = vst.msk [vmem:[%s4 + $0x20] sm:$0xff] %vm233, %v175
    %239 = vst.msk [vmem:[%s4 + $0x28] sm:$0xff] %vm233, %v180
    %240 = vst.msk [vmem:[%s4 + $0x30] sm:$0xff] %vm233, %v185
    %241 = vst.msk [vmem:[%s4 + $0x38] sm:$0xff] %vm233, %v190
    %242 = vst.msk [vmem:[%s4 + $0x40] sm:$0xff] %vm233, %v195
    %243 = vst.msk [vmem:[%s4 + $0x48] sm:$0xff] %vm233, %v200
    %244 = vst.msk [vmem:[%s4 + $0x50] sm:$0xff] %vm233, %v205
    %245 = vst.msk [vmem:[%s4 + $0x58] sm:$0xff] %vm233, %v210
    %246 = vst.msk [vmem:[%s4 + $0x60] sm:$0xff] %vm233, %v215
    %247 = vst.msk [vmem:[%s4 + $0x68] sm:$0xff] %vm233, %v220
    %248 = vst.msk [vmem:[%s4 + $0x70] sm:$0xff] %vm233, %v225
    %249 = vst.msk [vmem:[%s4 + $0x78] sm:$0xff] %vm233, %v230
    %v250 = vld [vmem:[%s3] sm:$0xff]
    %v251 = vld [vmem:[%s3 + $0x8] sm:$0xff]
    %v252 = vld [vmem:[%s3 + $0x10] sm:$0xff]
    %v253 = vld [vmem:[%s3 + $0x18] sm:$0xff]
    %v254 = vld [vmem:[%s3 + $0x20] sm:$0xff]
    %v255 = vld [vmem:[%s3 + $0x28] sm:$0xff]
    %v256 = vld [vmem:[%s3 + $0x30] sm:$0xff]
    %v257 = vld [vmem:[%s3 + $0x38] sm:$0xff]
    %v259 = vsel %vm233, %v155, 0
    %v262 = vsel %vm233, %v160, 0
    %v265 = vsel %vm233, %v165, 0
    %v268 = vsel %vm233, %v170, 0
    %v271 = vsel %vm233, %v175, 0
    %v274 = vsel %vm233, %v180, 0
    %v277 = vsel %vm233, %v185, 0
    %v280 = vsel %vm233, %v190, 0
    %v283 = vsel %vm233, %v195, 0
    %v286 = vsel %vm233, %v200, 0
    %v289 = vsel %vm233, %v205, 0
    %v292 = vsel %vm233, %v210, 0
    %v295 = vsel %vm233, %v215, 0
    %v298 = vsel %vm233, %v220, 0
    %v301 = vsel %vm233, %v225, 0
    %v304 = vsel %vm233, %v230, 0
    %306 = vmatprep.subr.mxu0 0.0
    %307 = vmatpush1.msra.mxu0 %v250
    %308 = vmatprep.subr.mxu0 0.0
    %309 = vmatpush1.msra.mxu0 %v251
    %310 = vmatprep.subr.mxu0 0.0
    %311 = vmatpush1.msra.mxu0 %v252
    %312 = vmatprep.subr.mxu0 0.0
    %313 = vmatpush1.msra.mxu0 %v253
    %314 = vmatprep.subr.mxu0 0.0
    %315 = vmatpush1.msra.mxu0 %v254
    %316 = vmatprep.subr.mxu0 0.0
    %317 = vmatpush1.msra.mxu0 %v255
    %318 = vmatprep.subr.mxu0 0.0
    %319 = vmatpush1.msra.mxu0 %v256
    %320 = vmatprep.subr.mxu0 0.0
    %321 = vmatpush1.msra.mxu0 %v257
    %322 = vmatprep.subr.mxu0 0.0
    %323 = vmatpush1.msra.mxu0 0.0
    %324 = vmatprep.subr.mxu0 0.0
    %325 = vmatpush1.msra.mxu0 0.0
    %326 = vmatprep.subr.mxu0 0.0
    %327 = vmatpush1.msra.mxu0 0.0
    %328 = vmatprep.subr.mxu0 0.0
    %329 = vmatpush1.msra.mxu0 0.0
    %330 = vmatprep.subr.mxu0 0.0
    %331 = vmatpush1.msra.mxu0 0.0
    %332 = vmatprep.subr.mxu0 0.0
    %333 = vmatpush1.msra.mxu0 0.0
    %334 = vmatprep.subr.mxu0 0.0
    %335 = vmatpush1.msra.mxu0 0.0
    %336 = vmatprep.subr.mxu0 0.0
    %337 = vmatpush1.msra.mxu0 0.0
    %338 = vmatprep.subr.mxu0 0.0
    %339 = vmatpush1.msra.mxu0 0.0
    %340 = vmatprep.subr.mxu0 0.0
    %341 = vmatpush1.msra.mxu0 0.0
    %342 = vmatprep.subr.mxu0 0.0
    %343 = vmatpush1.msra.mxu0 0.0
    %344 = vmatprep.subr.mxu0 0.0
    %345 = vmatpush1.msra.mxu0 0.0
    %346 = vmatprep.subr.mxu0 0.0
    %347 = vmatpush1.msra.mxu0 0.0
    %348 = vmatprep.subr.mxu0 0.0
    %349 = vmatpush1.msra.mxu0 0.0
    %350 = vmatprep.subr.mxu0 0.0
    %351 = vmatpush1.msra.mxu0 0.0
    %352 = vmatprep.subr.mxu0 0.0
    %353 = vmatpush1.msra.mxu0 0.0
    %354 = vmatprep.subr.mxu0 0.0
    %355 = vmatpush1.msra.mxu0 0.0
    %356 = vmatprep.subr.mxu0 0.0
    %357 = vmatpush1.msra.mxu0 0.0
    %358 = vmatprep.subr.mxu0 0.0
    %359 = vmatpush1.msra.mxu0 0.0
    %360 = vmatprep.subr.mxu0 0.0
    %361 = vmatpush1.msra.mxu0 0.0
    %362 = vmatprep.subr.mxu0 0.0
    %363 = vmatpush1.msra.mxu0 0.0
    %364 = vmatprep.subr.mxu0 0.0
    %365 = vmatpush1.msra.mxu0 0.0
    %366 = vmatprep.subr.mxu0 0.0
    %367 = vmatpush1.msra.mxu0 0.0
    %368 = vmatprep.subr.mxu0 0.0
    %369 = vmatpush1.msra.mxu0 0.0
    %370 = vmatprep.mubr.f32.mxu0 0.0
    %371 = vmatmul.mubr.f32.gmra.mrb[0].mxu0 %v259
    %v372 = vpop.f32.mrb[0].mxu0
    %v373 = vadd.f32 0.0, %v372
    %v374 = vpop.f32.mrb[0].mxu0
    %375 = vmatprep.mubr.f32.mxu0 0.0
    %376 = vmatmul.mubr.f32.gmra.mrb[0].mxu0 %v262
    %v377 = vpop.f32.mrb[0].mxu0
    %v378 = vadd.f32 0.0, %v377
    %v379 = vpop.f32.mrb[0].mxu0
    %380 = vmatprep.mubr.f32.mxu0 0.0
    %381 = vmatmul.mubr.f32.gmra.mrb[0].mxu0 %v265
    %v382 = vpop.f32.mrb[0].mxu0
    %v383 = vadd.f32 0.0, %v382
    %v384 = vpop.f32.mrb[0].mxu0
    %385 = vmatprep.mubr.f32.mxu0 0.0
    %386 = vmatmul.mubr.f32.gmra.mrb[0].mxu0 %v268
    %v387 = vpop.f32.mrb[0].mxu0
    %v388 = vadd.f32 0.0, %v387
    %v389 = vpop.f32.mrb[0].mxu0
    %390 = vmatprep.mubr.f32.mxu0 0.0
    %391 = vmatmul.mubr.f32.gmra.mrb[0].mxu0 %v271
    %v392 = vpop.f32.mrb[0].mxu0
    %v393 = vadd.f32 0.0, %v392
    %v394 = vpop.f32.mrb[0].mxu0
    %395 = vmatprep.mubr.f32.mxu0 0.0
    %396 = vmatmul.mubr.f32.gmra.mrb[0].mxu0 %v274
    %v397 = vpop.f32.mrb[0].mxu0
    %v398 = vadd.f32 0.0, %v397
    %v399 = vpop.f32.mrb[0].mxu0
    %400 = vmatprep.mubr.f32.mxu0 0.0
    %401 = vmatmul.mubr.f32.gmra.mrb[0].mxu0 %v277
    %v402 = vpop.f32.mrb[0].mxu0
    %v403 = vadd.f32 0.0, %v402
    %v404 = vpop.f32.mrb[0].mxu0
    %405 = vmatprep.mubr.f32.mxu0 0.0
    %406 = vmatmul.mubr.f32.gmra.mrb[0].mxu0 %v280
    %v407 = vpop.f32.mrb[0].mxu0
    %v408 = vadd.f32 0.0, %v407
    %v409 = vpop.f32.mrb[0].mxu0
    %410 = vmatprep.mubr.f32.mxu0 0.0
    %411 = vmatmul.mubr.f32.gmra.mrb[0].mxu0 %v283
    %v412 = vpop.f32.mrb[0].mxu0
    %v413 = vadd.f32 0.0, %v412
    %v414 = vpop.f32.mrb[0].mxu0
    %415 = vmatprep.mubr.f32.mxu0 0.0
    %416 = vmatmul.mubr.f32.gmra.mrb[0].mxu0 %v286
    %v417 = vpop.f32.mrb[0].mxu0
    %v418 = vadd.f32 0.0, %v417
    %v419 = vpop.f32.mrb[0].mxu0
    %420 = vmatprep.mubr.f32.mxu0 0.0
    %421 = vmatmul.mubr.f32.gmra.mrb[0].mxu0 %v289
    %v422 = vpop.f32.mrb[0].mxu0
    %v423 = vadd.f32 0.0, %v422
    %v424 = vpop.f32.mrb[0].mxu0
    %425 = vmatprep.mubr.f32.mxu0 0.0
    %426 = vmatmul.mubr.f32.gmra.mrb[0].mxu0 %v292
    %v427 = vpop.f32.mrb[0].mxu0
    %v428 = vadd.f32 0.0, %v427
    %v429 = vpop.f32.mrb[0].mxu0
    %430 = vmatprep.mubr.f32.mxu0 0.0
    %431 = vmatmul.mubr.f32.gmra.mrb[0].mxu0 %v295
    %v432 = vpop.f32.mrb[0].mxu0
    %v433 = vadd.f32 0.0, %v432
    %v434 = vpop.f32.mrb[0].mxu0
    %435 = vmatprep.mubr.f32.mxu0 0.0
    %436 = vmatmul.mubr.f32.gmra.mrb[0].mxu0 %v298
    %v437 = vpop.f32.mrb[0].mxu0
    %v438 = vadd.f32 0.0, %v437
    %v439 = vpop.f32.mrb[0].mxu0
    %440 = vmatprep.mubr.f32.mxu0 0.0
    %441 = vmatmul.mubr.f32.gmra.mrb[0].mxu0 %v301
    %v442 = vpop.f32.mrb[0].mxu0
    %v443 = vadd.f32 0.0, %v442
    %v444 = vpop.f32.mrb[0].mxu0
    %445 = vmatprep.mubr.f32.mxu0 0.0
    %446 = vmatmul.mubr.f32.gmra.mrb[0].mxu0 %v304
    %v447 = vpop.f32.mrb[0].mxu0
    %v448 = vadd.f32 0.0, %v447
    %v449 = vpop.f32.mrb[0].mxu0
    %450 = vdwg.mxu0
    %vm451 = vcmask 64512
    %452 = vst.msk [vmem:[%s6] sm:$0xff] %vm451, %v373
    %453 = vst.msk [vmem:[%s6 + $0x8] sm:$0xff] %vm451, %v378
    %454 = vst.msk [vmem:[%s6 + $0x10] sm:$0xff] %vm451, %v383
    %455 = vst.msk [vmem:[%s6 + $0x18] sm:$0xff] %vm451, %v388
    %456 = vst.msk [vmem:[%s6 + $0x20] sm:$0xff] %vm451, %v393
    %457 = vst.msk [vmem:[%s6 + $0x28] sm:$0xff] %vm451, %v398
    %458 = vst.msk [vmem:[%s6 + $0x30] sm:$0xff] %vm451, %v403
    %459 = vst.msk [vmem:[%s6 + $0x38] sm:$0xff] %vm451, %v408
    %460 = vst.msk [vmem:[%s6 + $0x40] sm:$0xff] %vm451, %v413
    %461 = vst.msk [vmem:[%s6 + $0x48] sm:$0xff] %vm451, %v418
    %462 = vst.msk [vmem:[%s6 + $0x50] sm:$0xff] %vm451, %v423
    %463 = vst.msk [vmem:[%s6 + $0x58] sm:$0xff] %vm451, %v428
    %464 = vst.msk [vmem:[%s6 + $0x60] sm:$0xff] %vm451, %v433
    %465 = vst.msk [vmem:[%s6 + $0x68] sm:$0xff] %vm451, %v438
    %466 = vst.msk [vmem:[%s6 + $0x70] sm:$0xff] %vm451, %v443
    %467 = vst.msk [vmem:[%s6 + $0x78] sm:$0xff] %vm451, %v448
    %v468 = vld [vmem:[%s2] sm:$0xff]
    %v469 = vld [vmem:[%s2 + $0x8] sm:$0xff]
    %v470 = vld [vmem:[%s2 + $0x10] sm:$0xff]
    %v471 = vld [vmem:[%s2 + $0x18] sm:$0xff]
    %v472 = vld [vmem:[%s2 + $0x20] sm:$0xff]
    %v473 = vld [vmem:[%s2 + $0x28] sm:$0xff]
    %v474 = vld [vmem:[%s2 + $0x30] sm:$0xff]
    %v475 = vld [vmem:[%s2 + $0x38] sm:$0xff]
    %476 = vmatprep.subr.mxu0 0.0
    %477 = vmatpush1.msra.mxu0 %v468
    %478 = vmatprep.subr.mxu0 0.0
    %479 = vmatpush1.msra.mxu0 %v469
    %480 = vmatprep.subr.mxu0 0.0
    %481 = vmatpush1.msra.mxu0 %v470
    %482 = vmatprep.subr.mxu0 0.0
    %483 = vmatpush1.msra.mxu0 %v471
    %484 = vmatprep.subr.mxu0 0.0
    %485 = vmatpush1.msra.mxu0 %v472
    %486 = vmatprep.subr.mxu0 0.0
    %487 = vmatpush1.msra.mxu0 %v473
    %488 = vmatprep.subr.mxu0 0.0
    %489 = vmatpush1.msra.mxu0 %v474
    %490 = vmatprep.subr.mxu0 0.0
    %491 = vmatpush1.msra.mxu0 %v475
    %492 = vmatprep.subr.mxu0 0.0
    %493 = vmatpush1.msra.mxu0 0.0
    %494 = vmatprep.subr.mxu0 0.0
    %495 = vmatpush1.msra.mxu0 0.0
    %496 = vmatprep.subr.mxu0 0.0
    %497 = vmatpush1.msra.mxu0 0.0
    %498 = vmatprep.subr.mxu0 0.0
    %499 = vmatpush1.msra.mxu0 0.0
    %500 = vmatprep.subr.mxu0 0.0
    %501 = vmatpush1.msra.mxu0 0.0
    %502 = vmatprep.subr.mxu0 0.0
    %503 = vmatpush1.msra.mxu0 0.0
    %504 = vmatprep.subr.mxu0 0.0
    %505 = vmatpush1.msra.mxu0 0.0
    %506 = vmatprep.subr.mxu0 0.0
    %507 = vmatpush1.msra.mxu0 0.0
    %508 = vmatprep.subr.mxu0 0.0
    %509 = vmatpush1.msra.mxu0 0.0
    %510 = vmatprep.subr.mxu0 0.0
    %511 = vmatpush1.msra.mxu0 0.0
    %512 = vmatprep.subr.mxu0 0.0
    %513 = vmatpush1.msra.mxu0 0.0
    %514 = vmatprep.subr.mxu0 0.0
    %515 = vmatpush1.msra.mxu0 0.0
    %516 = vmatprep.subr.mxu0 0.0
    %517 = vmatpush1.msra.mxu0 0.0
    %518 = vmatprep.subr.mxu0 0.0
    %519 = vmatpush1.msra.mxu0 0.0
    %520 = vmatprep.subr.mxu0 0.0
    %521 = vmatpush1.msra.mxu0 0.0
    %522 = vmatprep.subr.mxu0 0.0
    %523 = vmatpush1.msra.mxu0 0.0
    %524 = vmatprep.subr.mxu0 0.0
    %525 = vmatpush1.msra.mxu0 0.0
    %526 = vmatprep.subr.mxu0 0.0
    %527 = vmatpush1.msra.mxu0 0.0
    %528 = vmatprep.subr.mxu0 0.0
    %529 = vmatpush1.msra.mxu0 0.0
    %530 = vmatprep.subr.mxu0 0.0
    %531 = vmatpush1.msra.mxu0 0.0
    %532 = vmatprep.subr.mxu0 0.0
    %533 = vmatpush1.msra.mxu0 0.0
    %534 = vmatprep.subr.mxu0 0.0
    %535 = vmatpush1.msra.mxu0 0.0
    %536 = vmatprep.subr.mxu0 0.0
    %537 = vmatpush1.msra.mxu0 0.0
    %538 = vmatprep.subr.mxu0 0.0
    %539 = vmatpush1.msra.mxu0 0.0
    %540 = vmatprep.mubr.f32.mxu0 0.0
    %541 = vmatmul.mubr.f32.gmra.mrb[0].mxu0 %v259
    %v542 = vpop.f32.mrb[0].mxu0
    %v543 = vadd.f32 0.0, %v542
    %v544 = vpop.f32.mrb[0].mxu0
    %545 = vmatprep.mubr.f32.mxu0 0.0
    %546 = vmatmul.mubr.f32.gmra.mrb[0].mxu0 %v262
    %v547 = vpop.f32.mrb[0].mxu0
    %v548 = vadd.f32 0.0, %v547
    %v549 = vpop.f32.mrb[0].mxu0
    %550 = vmatprep.mubr.f32.mxu0 0.0
    %551 = vmatmul.mubr.f32.gmra.mrb[0].mxu0 %v265
    %v552 = vpop.f32.mrb[0].mxu0
    %v553 = vadd.f32 0.0, %v552
    %v554 = vpop.f32.mrb[0].mxu0
    %555 = vmatprep.mubr.f32.mxu0 0.0
    %556 = vmatmul.mubr.f32.gmra.mrb[0].mxu0 %v268
    %v557 = vpop.f32.mrb[0].mxu0
    %v558 = vadd.f32 0.0, %v557
    %v559 = vpop.f32.mrb[0].mxu0
    %560 = vmatprep.mubr.f32.mxu0 0.0
    %561 = vmatmul.mubr.f32.gmra.mrb[0].mxu0 %v271
    %v562 = vpop.f32.mrb[0].mxu0
    %v563 = vadd.f32 0.0, %v562
    %v564 = vpop.f32.mrb[0].mxu0
    %565 = vmatprep.mubr.f32.mxu0 0.0
    %566 = vmatmul.mubr.f32.gmra.mrb[0].mxu0 %v274
    %v567 = vpop.f32.mrb[0].mxu0
    %v568 = vadd.f32 0.0, %v567
    %v569 = vpop.f32.mrb[0].mxu0
    %570 = vmatprep.mubr.f32.mxu0 0.0
    %571 = vmatmul.mubr.f32.gmra.mrb[0].mxu0 %v277
    %v572 = vpop.f32.mrb[0].mxu0
    %v573 = vadd.f32 0.0, %v572
    %v574 = vpop.f32.mrb[0].mxu0
    %575 = vmatprep.mubr.f32.mxu0 0.0
    %576 = vmatmul.mubr.f32.gmra.mrb[0].mxu0 %v280
    %v577 = vpop.f32.mrb[0].mxu0
    %v578 = vadd.f32 0.0, %v577
    %v579 = vpop.f32.mrb[0].mxu0
    %580 = vmatprep.mubr.f32.mxu0 0.0
    %581 = vmatmul.mubr.f32.gmra.mrb[0].mxu0 %v283
    %v582 = vpop.f32.mrb[0].mxu0
    %v583 = vadd.f32 0.0, %v582
    %v584 = vpop.f32.mrb[0].mxu0
    %585 = vmatprep.mubr.f32.mxu0 0.0
    %586 = vmatmul.mubr.f32.gmra.mrb[0].mxu0 %v286
    %v587 = vpop.f32.mrb[0].mxu0
    %v588 = vadd.f32 0.0, %v587
    %v589 = vpop.f32.mrb[0].mxu0
    %590 = vmatprep.mubr.f32.mxu0 0.0
    %591 = vmatmul.mubr.f32.gmra.mrb[0].mxu0 %v289
    %v592 = vpop.f32.mrb[0].mxu0
    %v593 = vadd.f32 0.0, %v592
    %v594 = vpop.f32.mrb[0].mxu0
    %595 = vmatprep.mubr.f32.mxu0 0.0
    %596 = vmatmul.mubr.f32.gmra.mrb[0].mxu0 %v292
    %v597 = vpop.f32.mrb[0].mxu0
    %v598 = vadd.f32 0.0, %v597
    %v599 = vpop.f32.mrb[0].mxu0
    %600 = vmatprep.mubr.f32.mxu0 0.0
    %601 = vmatmul.mubr.f32.gmra.mrb[0].mxu0 %v295
    %v602 = vpop.f32.mrb[0].mxu0
    %v603 = vadd.f32 0.0, %v602
    %v604 = vpop.f32.mrb[0].mxu0
    %605 = vmatprep.mubr.f32.mxu0 0.0
    %606 = vmatmul.mubr.f32.gmra.mrb[0].mxu0 %v298
    %v607 = vpop.f32.mrb[0].mxu0
    %v608 = vadd.f32 0.0, %v607
    %v609 = vpop.f32.mrb[0].mxu0
    %610 = vmatprep.mubr.f32.mxu0 0.0
    %611 = vmatmul.mubr.f32.gmra.mrb[0].mxu0 %v301
    %v612 = vpop.f32.mrb[0].mxu0
    %v613 = vadd.f32 0.0, %v612
    %v614 = vpop.f32.mrb[0].mxu0
    %615 = vmatprep.mubr.f32.mxu0 0.0
    %616 = vmatmul.mubr.f32.gmra.mrb[0].mxu0 %v304
    %v617 = vpop.f32.mrb[0].mxu0
    %v618 = vadd.f32 0.0, %v617
    %v619 = vpop.f32.mrb[0].mxu0
    %620 = vdwg.mxu0
    %621 = vxpose.xlu0.b32.start [1/16] %v543, 128
    %622 = vxpose.xlu0.b32.cont [2/16] %v548, 128
    %623 = vxpose.xlu0.b32.cont [3/16] %v553, 128
    %624 = vxpose.xlu0.b32.cont [4/16] %v558, 128
    %625 = vxpose.xlu0.b32.cont [5/16] %v563, 128
    %626 = vxpose.xlu0.b32.cont [6/16] %v568, 128
    %627 = vxpose.xlu0.b32.cont [7/16] %v573, 128
    %628 = vxpose.xlu0.b32.cont [8/16] %v578, 128
    %629 = vxpose.xlu0.b32.cont [9/16] %v583, 128
    %630 = vxpose.xlu0.b32.cont [10/16] %v588, 128
    %631 = vxpose.xlu0.b32.cont [11/16] %v593, 128
    %632 = vxpose.xlu0.b32.cont [12/16] %v598, 128
    %633 = vxpose.xlu0.b32.cont [13/16] %v603, 128
    %634 = vxpose.xlu0.b32.cont [14/16] %v608, 128
    %635 = vxpose.xlu0.b32.cont [15/16] %v613, 128
    %636 = vxpose.xlu0.b32.end [16/16] %v618, 128
    %v637 = vpop.trf.xlu0
    %v638 = vpop.trf.xlu0
    %v639 = vpop.trf.xlu0
    %v640 = vpop.trf.xlu0
    %v641 = vpop.trf.xlu0
    %v642 = vpop.trf.xlu0
    %v643 = vpop.trf.xlu0
    %v644 = vpop.trf.xlu0
    %v645 = vpop.trf.xlu0
    %v646 = vpop.trf.xlu0
    %v647 = vpop.trf.xlu0
    %v648 = vpop.trf.xlu0
    %v649 = vpop.trf.xlu0
    %v650 = vpop.trf.xlu0
    %v651 = vpop.trf.xlu0
    %v652 = vpop.trf.xlu0
    %653 = vst [vmem:[#allocation2] sm:$0xff] %v637
    // Predicated region
    $region18: #{tpu_custom_call.1} parent=1 // pred_check
      _
    $region19: #{tpu_custom_call.1} parent=1 // pred_check_branch
      %655 = sbr.rel (0) target = $region21
    $region20: #{tpu_custom_call.1} parent=1 // pred_region
      _
    $region21: #{tpu_custom_call.1} parent=1 // pred_fallthru
      _
    // Predicated region
    $region22: #{tpu_custom_call.1} parent=1 // pred_check
      _
    $region23: #{tpu_custom_call.1} parent=1 // pred_check_branch
      %657 = sbr.rel (0) target = $region25
    $region24: #{tpu_custom_call.1} parent=1 // pred_region
      %s659 = ssub.s32 128, 128
      %660 = vsyncadd [#allocation3], %s659
      %s662 = sshll.u32 [#allocation2], 4
      %s663 = int_to_ptr.vmem [resolvable:$true] %s662
      %665 = dma.vmem_to_hbm [thread:$0]  %s663, 128, %s5, [#allocation3]
    $region25: #{tpu_custom_call.1} parent=1 // pred_fallthru
      _
    // Predicated region
    $region26: #{tpu_custom_call.1} parent=1 // pred_check
      _
    $region27: #{tpu_custom_call.1} parent=1 // pred_check_branch
      %667 = sbr.rel (0) target = $region29
    $region28: #{tpu_custom_call.1} parent=1 // pred_region
      _
    $region29: #{tpu_custom_call.1} parent=1 // pred_fallthru
      _
    // Predicated region
    $region30: #{tpu_custom_call.1} parent=1 // pred_check
      _
    $region31: #{tpu_custom_call.1} parent=1 // pred_check_branch
      %669 = sbr.rel (0) target = $region33
    $region32: #{tpu_custom_call.1} parent=1 // pred_region
      _
    $region33: #{tpu_custom_call.1} parent=1 // pred_fallthru
      _
    // Predicated region
    $region34: #{tpu_custom_call.1} parent=1 // pred_check
      _
    $region35: #{tpu_custom_call.1} parent=1 // pred_check_branch
      %671 = sbr.rel (0) target = $region37
    $region36: #{tpu_custom_call.1} parent=1 // pred_region
      %672 = dma.done [#allocation3], 128
    $region37: #{tpu_custom_call.1} parent=1 // pred_fallthru
      _
    // Predicated region
    $region38: #{tpu_custom_call.1} parent=1 // pred_check
      _
    $region39: #{tpu_custom_call.1} parent=1 // pred_check_branch
      %674 = sbr.rel (0) target = $region41
    $region40: #{tpu_custom_call.1} parent=1 // pred_region
      _
    $region41: #{tpu_custom_call.1} parent=1 // pred_fallthru
      _
    %675 = vsyncpa [#allocation3], 1

</llo_original>
